<compile_context>
chip_gen: v5e
topology: v5e:2x2
jax: 0.10.0
libtpu: 0.0.40
codegen_flags: <defaults>
</compile_context>

<pallas_src>
import functools

import jax
import jax.numpy as jnp
from jax.experimental import pallas as pl
from jax.experimental.pallas import tpu as pltpu


def res_conv_block_kernel(x_ref, pp_ref, w0_ref, w1_ref, o_ref,
                          *, kernel_size, pad_l):
    """One (Nb, C, L) batch block per grid step.

    x_ref  : (Nb, C, L)   input block
    pp_ref : (C, 4)       packed per-channel params [s0, b0, bf0, cb1]
    w0_ref : (C, K*C)     conv0 weight, bn1 pre-folded, stacked over taps
    w1_ref : (C, K*C)     conv1 weight, stacked over taps
    o_ref  : (Nb, C, L)   output block
    """
    nb, C, L = x_ref.shape

    s0 = pp_ref[:, 0:1]      # folded bn0 scale            (C, 1)
    b0 = pp_ref[:, 1:2]      # folded bn0 shift            (C, 1)
    bf0 = pp_ref[:, 2:3]     # bn1-folded conv0 bias       (C, 1)
    cb1 = pp_ref[:, 3:4]     # conv1 bias                  (C, 1)
    w0 = w0_ref[...]         # (C, K*C)
    w1 = w1_ref[...]         # (C, K*C)

    # Lane-position iota, hoisted out of all loops (JAX does not CSE it).
    pos = jax.lax.broadcasted_iota(jnp.int32, (C, L), 1)

    def stacked_taps(h):
        """Stack K shifted views of h along sublanes -> (K*C, L).

        Tap k needs h[:, l + k - pad_l] with zeros outside [0, L).  The shift
        is done with pltpu.roll (XLU rotate, no relayout copy) + an edge mask,
        instead of zero-pad + concatenate + unaligned lane slices.
        """
        parts = []
        for k in range(kernel_size):          # static unroll, K is small
            off = k - pad_l
            if off == 0:
                parts.append(h)
            else:
                r = pltpu.roll(h, (-off) % L, axis=1)  # r[:, l] = h[:, (l+off)%L]
                valid = jnp.logical_and(pos + off >= 0, pos + off < L)
                parts.append(jnp.where(valid, r, 0.0))
        return jnp.concatenate(parts, axis=0)          # (K*C, L)

    for b in range(nb):                        # static unroll (Nb kept small)
        x = x_ref[b].astype(jnp.float32)       # (C, L)
        # bn0 (folded) + relu0     (dropout0 = identity at eval)
        h = jnp.maximum(x * s0 + b0, 0.0)
        # conv0 with bn1 folded into weights/bias, then relu1
        h = jnp.dot(w0, stacked_taps(h),
                    preferred_element_type=jnp.float32) + bf0
        h = jnp.maximum(h, 0.0)                # (dropout1 = identity at eval)
        # conv1
        h = jnp.dot(w1, stacked_taps(h),
                    preferred_element_type=jnp.float32) + cb1
        # residual
        o_ref[b] = (x + h).astype(o_ref.dtype)


def _pick_block_batch(N, C, L, itemsize, *, target_bytes=512 * 1024,
                      max_block=16, min_grid_steps=2):
    """Largest divisor of N whose (Nb, C, L) block stays under target_bytes,
    capped so (a) the grid keeps >= min_grid_steps when N allows (both v7x
    TensorCores stay busy) and (b) the in-kernel static unroll stays short."""
    cap = max(1, target_bytes // max(1, C * L * itemsize))
    cap = min(cap, max_block)
    if N >= min_grid_steps:
        cap = min(cap, N // min_grid_steps)
    nb = 1
    for d in range(1, N + 1):
        if N % d == 0 and d <= cap:
            nb = d
    return nb


def res_conv_block(x, params, kernel_size, *, block_batch=None):
    """x: (N, C, L) float32.  params: dict of BN / conv parameters."""
    N, C, L = x.shape
    K = kernel_size
    pad_l = (K - 1) // 2
    eps = 1e-5

    def fold_bn(gamma, beta, mean, var):
        scale = gamma / jnp.sqrt(var + eps)
        return scale, beta - mean * scale

    s0, b0 = fold_bn(params["bn0_gamma"], params["bn0_beta"],
                     params["bn0_mean"], params["bn0_var"])
    s1, b1 = fold_bn(params["bn1_gamma"], params["bn1_beta"],
                     params["bn1_mean"], params["bn1_var"])

    # Fold bn1 + conv0 bias into conv0:  bn1(conv0(h)) == w0f (*) h + bf0.
    w0f = params["conv0_w"] * s1[:, None, None]          # (O, I, K)
    bf0 = s1 * params["conv0_b"] + b1
    w1 = params["conv1_w"]
    cb1 = params["conv1_b"]

    # (O, I, K) -> (O, K*I); column index k*C + i matches the stacked operand.
    def stack_w(w):
        return jnp.transpose(w, (0, 2, 1)).reshape(C, K * C)

    w0s = stack_w(w0f).astype(jnp.float32)
    w1s = stack_w(w1).astype(jnp.float32)

    # Pack remaining per-channel params into one operand (one DMA per step).
    packed = jnp.stack([s0, b0, bf0, cb1], axis=1).astype(jnp.float32)  # (C,4)

    nb = (block_batch if block_batch is not None
          else _pick_block_batch(N, C, L, x.dtype.itemsize))
    assert N % nb == 0, "block_batch must divide N"

    kern = functools.partial(res_conv_block_kernel,
                             kernel_size=K, pad_l=pad_l)

    return pl.pallas_call(
        kern,
        out_shape=jax.ShapeDtypeStruct((N, C, L), x.dtype),
        grid_spec=pltpu.PrefetchScalarGridSpec(
            num_scalar_prefetch=0,
            grid=(N // nb,),
            in_specs=[
                pl.BlockSpec((nb, C, L), lambda n: (n, 0, 0)),   # x
                pl.BlockSpec((C, 4), lambda n: (0, 0)),          # packed params
                pl.BlockSpec((C, K * C), lambda n: (0, 0)),      # conv0 (bn1 folded)
                pl.BlockSpec((C, K * C), lambda n: (0, 0)),      # conv1
            ],
            out_specs=pl.BlockSpec((nb, C, L), lambda n: (n, 0, 0)),
        ),
        compiler_params=pltpu.CompilerParams(
            dimension_semantics=("parallel",)),
    )(x, packed, w0s, w1s)


def ref_forward(x, params, kernel_size):
    """Pure-JAX reference replicating the PyTorch forward (eval mode)."""
    eps = 1e-5
    pad_l = (kernel_size - 1) // 2
    pad_r = kernel_size - 1 - pad_l

    def bn(h, g, b, m, v):
        return (h - m[None, :, None]) / jnp.sqrt(v + eps)[None, :, None] \
               * g[None, :, None] + b[None, :, None]

    def conv(h, w, b):
        y = jax.lax.conv_general_dilated(
            h, w, window_strides=(1,), padding=[(pad_l, pad_r)],
            dimension_numbers=("NCH", "OIH", "NCH"))
        return y + b[None, :, None]

    h = jnp.maximum(bn(x, params["bn0_gamma"], params["bn0_beta"],
                       params["bn0_mean"], params["bn0_var"]), 0.0)
    h = conv(h, params["conv0_w"], params["conv0_b"])
    h = jnp.maximum(bn(h, params["bn1_gamma"], params["bn1_beta"],
                       params["bn1_mean"], params["bn1_var"]), 0.0)
    h = conv(h, params["conv1_w"], params["conv1_b"])
    return x + h


if __name__ == "__main__":
    N, C, L = 2, 8, 128
    kernel_size = 3
    # drop_rate = 0.1  # dropout is identity in eval mode

    key = jax.random.PRNGKey(0)
    ks = jax.random.split(key, 12)

    x = jax.random.normal(ks[0], (N, C, L), jnp.float32)

    params = {
        "bn0_gamma": 1.0 + 0.1 * jax.random.normal(ks[1], (C,), jnp.float32),
        "bn0_beta": 0.1 * jax.random.normal(ks[2], (C,), jnp.float32),
        "bn0_mean": 0.1 * jax.random.normal(ks[3], (C,), jnp.float32),
        "bn0_var": 0.5 + jax.random.uniform(ks[4], (C,), jnp.float32),
        "conv0_w": 0.1 * jax.random.normal(ks[5], (C, C, kernel_size), jnp.float32),
        "conv0_b": 0.1 * jax.random.normal(ks[6], (C,), jnp.float32),
        "bn1_gamma": 1.0 + 0.1 * jax.random.normal(ks[7], (C,), jnp.float32),
        "bn1_beta": 0.1 * jax.random.normal(ks[8], (C,), jnp.float32),
        "bn1_mean": 0.1 * jax.random.normal(ks[9], (C,), jnp.float32),
        "bn1_var": 0.5 + jax.random.uniform(ks[10], (C,), jnp.float32),
        "conv1_w": 0.1 * jax.random.normal(ks[11], (C, C, kernel_size), jnp.float32),
        "conv1_b": 0.05 * jnp.arange(C, dtype=jnp.float32),
    }

    out = res_conv_block(x, params, kernel_size)
    out = jax.block_until_ready(out)

    ref = ref_forward(x, params, kernel_size)
    assert out.shape == (N, C, L)
    max_err = jnp.max(jnp.abs(out - ref))
    assert jnp.allclose(out, ref, rtol=1e-4, atol=1e-4), \
        f"max abs err = {max_err}"

    print("KERNEL_OK")
</pallas_src>

<mosaic_0001>
module attributes {stable_mosaic.version = 11 : i64} {
  func.func @res_conv_block_kernel(%arg0: i32, %arg1: memref<1x8x128xf32, #tpu.memory_space<vmem>>, %arg2: memref<8x4xf32, #tpu.memory_space<vmem>>, %arg3: memref<8x24xf32, #tpu.memory_space<vmem>>, %arg4: memref<8x24xf32, #tpu.memory_space<vmem>>, %arg5: memref<1x8x128xf32, #tpu.memory_space<vmem>>) attributes {dimension_semantics = [#tpu.dimension_semantics<parallel>], iteration_bounds = array<i64: 2>, scalar_prefetch = 0 : i64, scratch_operands = 0 : i64, tpu.core_type = #tpu.core_type<tc>, window_params = [{transform_indices = @transform_0, window_bounds = array<i64: 1, 8, 128>}, {pipeline_mode = #tpu.pipeline_mode<synchronous>, transform_indices = @transform_1, window_bounds = array<i64: 8, 4>}, {pipeline_mode = #tpu.pipeline_mode<synchronous>, transform_indices = @transform_2, window_bounds = array<i64: 8, 24>}, {pipeline_mode = #tpu.pipeline_mode<synchronous>, transform_indices = @transform_3, window_bounds = array<i64: 8, 24>}, {transform_indices = @transform_4, window_bounds = array<i64: 1, 8, 128>}]} {
    %c0 = arith.constant 0 : index
    %c0_0 = arith.constant 0 : index
    %0 = vector.load %arg2[%c0, %c0_0] : memref<8x4xf32, #tpu.memory_space<vmem>>, vector<8x1xf32>
    %c0_1 = arith.constant 0 : index
    %c1 = arith.constant 1 : index
    %1 = vector.load %arg2[%c0_1, %c1] : memref<8x4xf32, #tpu.memory_space<vmem>>, vector<8x1xf32>
    %c0_2 = arith.constant 0 : index
    %c2 = arith.constant 2 : index
    %2 = vector.load %arg2[%c0_2, %c2] : memref<8x4xf32, #tpu.memory_space<vmem>>, vector<8x1xf32>
    %c0_3 = arith.constant 0 : index
    %c3 = arith.constant 3 : index
    %3 = vector.load %arg2[%c0_3, %c3] : memref<8x4xf32, #tpu.memory_space<vmem>>, vector<8x1xf32>
    %c0_4 = arith.constant 0 : index
    %c0_5 = arith.constant 0 : index
    %4 = vector.load %arg3[%c0_4, %c0_5] : memref<8x24xf32, #tpu.memory_space<vmem>>, vector<8x24xf32>
    %c0_6 = arith.constant 0 : index
    %c0_7 = arith.constant 0 : index
    %5 = vector.load %arg4[%c0_6, %c0_7] : memref<8x24xf32, #tpu.memory_space<vmem>>, vector<8x24xf32>
    %6 = tpu.iota {dimensions = array<i32: 1>} : vector<8x128xi32>
    %c0_8 = arith.constant 0 : index
    %c0_9 = arith.constant 0 : index
    %c0_10 = arith.constant 0 : index
    %7 = vector.load %arg1[%c0_8, %c0_9, %c0_10] : memref<1x8x128xf32, #tpu.memory_space<vmem>>, vector<1x8x128xf32>
    %8 = vector.shape_cast %7 : vector<1x8x128xf32> to vector<8x128xf32>
    %9 = vector.broadcast %0 : vector<8x1xf32> to vector<8x128xf32>
    %10 = arith.mulf %8, %9 : vector<8x128xf32>
    %11 = vector.broadcast %1 : vector<8x1xf32> to vector<8x128xf32>
    %12 = arith.addf %10, %11 : vector<8x128xf32>
    %cst = arith.constant 0.000000e+00 : f32
    %13 = vector.broadcast %cst : f32 to vector<8x128xf32>
    %14 = arith.maximumf %12, %13 : vector<8x128xf32>
    %c1_i32 = arith.constant 1 : i32
    %15 = tpu.dynamic_rotate %14 by %c1_i32 dim 1 : vector<8x128xf32>, i32 -> vector<8x128xf32>
    %c-1_i32 = arith.constant -1 : i32
    %16 = vector.broadcast %c-1_i32 : i32 to vector<8x128xi32>
    %17 = arith.addi %6, %16 : vector<8x128xi32>
    %c0_i32 = arith.constant 0 : i32
    %18 = vector.broadcast %c0_i32 : i32 to vector<8x128xi32>
    %19 = arith.cmpi sge, %17, %18 : vector<8x128xi32>
    %c-1_i32_11 = arith.constant -1 : i32
    %20 = vector.broadcast %c-1_i32_11 : i32 to vector<8x128xi32>
    %21 = arith.addi %6, %20 : vector<8x128xi32>
    %c128_i32 = arith.constant 128 : i32
    %22 = vector.broadcast %c128_i32 : i32 to vector<8x128xi32>
    %23 = arith.cmpi slt, %21, %22 : vector<8x128xi32>
    %24 = arith.andi %19, %23 : vector<8x128xi1>
    %cst_12 = arith.constant 0.000000e+00 : f32
    %25 = vector.broadcast %cst_12 : f32 to vector<8x128xf32>
    %26 = arith.select %24, %15, %25 : vector<8x128xi1>, vector<8x128xf32>
    %c127_i32 = arith.constant 127 : i32
    %27 = tpu.dynamic_rotate %14 by %c127_i32 dim 1 : vector<8x128xf32>, i32 -> vector<8x128xf32>
    %c1_i32_13 = arith.constant 1 : i32
    %28 = vector.broadcast %c1_i32_13 : i32 to vector<8x128xi32>
    %29 = arith.addi %6, %28 : vector<8x128xi32>
    %c0_i32_14 = arith.constant 0 : i32
    %30 = vector.broadcast %c0_i32_14 : i32 to vector<8x128xi32>
    %31 = arith.cmpi sge, %29, %30 : vector<8x128xi32>
    %c1_i32_15 = arith.constant 1 : i32
    %32 = vector.broadcast %c1_i32_15 : i32 to vector<8x128xi32>
    %33 = arith.addi %6, %32 : vector<8x128xi32>
    %c128_i32_16 = arith.constant 128 : i32
    %34 = vector.broadcast %c128_i32_16 : i32 to vector<8x128xi32>
    %35 = arith.cmpi slt, %33, %34 : vector<8x128xi32>
    %36 = arith.andi %31, %35 : vector<8x128xi1>
    %cst_17 = arith.constant 0.000000e+00 : f32
    %37 = vector.broadcast %cst_17 : f32 to vector<8x128xf32>
    %38 = arith.select %36, %27, %37 : vector<8x128xi1>, vector<8x128xf32>
    %39 = tpu.concatenate %26, %14, %38 in 0 : vector<8x128xf32>, vector<8x128xf32>, vector<8x128xf32> -> vector<24x128xf32>
    %cst_18 = arith.constant dense<0.000000e+00> : vector<8x128xf32>
    %40 = tpu.matmul %4, %39, %cst_18 {dimension_numbers = #tpu.dot_dimension_numbers<[1], [0], [0], [1], [0, 0, 1, 1], [], []>} : vector<8x24xf32>, vector<24x128xf32>, vector<8x128xf32> -> vector<8x128xf32>
    %41 = vector.broadcast %2 : vector<8x1xf32> to vector<8x128xf32>
    %42 = arith.addf %40, %41 : vector<8x128xf32>
    %cst_19 = arith.constant 0.000000e+00 : f32
    %43 = vector.broadcast %cst_19 : f32 to vector<8x128xf32>
    %44 = arith.maximumf %42, %43 : vector<8x128xf32>
    %c1_i32_20 = arith.constant 1 : i32
    %45 = tpu.dynamic_rotate %44 by %c1_i32_20 dim 1 : vector<8x128xf32>, i32 -> vector<8x128xf32>
    %c-1_i32_21 = arith.constant -1 : i32
    %46 = vector.broadcast %c-1_i32_21 : i32 to vector<8x128xi32>
    %47 = arith.addi %6, %46 : vector<8x128xi32>
    %c0_i32_22 = arith.constant 0 : i32
    %48 = vector.broadcast %c0_i32_22 : i32 to vector<8x128xi32>
    %49 = arith.cmpi sge, %47, %48 : vector<8x128xi32>
    %c-1_i32_23 = arith.constant -1 : i32
    %50 = vector.broadcast %c-1_i32_23 : i32 to vector<8x128xi32>
    %51 = arith.addi %6, %50 : vector<8x128xi32>
    %c128_i32_24 = arith.constant 128 : i32
    %52 = vector.broadcast %c128_i32_24 : i32 to vector<8x128xi32>
    %53 = arith.cmpi slt, %51, %52 : vector<8x128xi32>
    %54 = arith.andi %49, %53 : vector<8x128xi1>
    %cst_25 = arith.constant 0.000000e+00 : f32
    %55 = vector.broadcast %cst_25 : f32 to vector<8x128xf32>
    %56 = arith.select %54, %45, %55 : vector<8x128xi1>, vector<8x128xf32>
    %c127_i32_26 = arith.constant 127 : i32
    %57 = tpu.dynamic_rotate %44 by %c127_i32_26 dim 1 : vector<8x128xf32>, i32 -> vector<8x128xf32>
    %c1_i32_27 = arith.constant 1 : i32
    %58 = vector.broadcast %c1_i32_27 : i32 to vector<8x128xi32>
    %59 = arith.addi %6, %58 : vector<8x128xi32>
    %c0_i32_28 = arith.constant 0 : i32
    %60 = vector.broadcast %c0_i32_28 : i32 to vector<8x128xi32>
    %61 = arith.cmpi sge, %59, %60 : vector<8x128xi32>
    %c1_i32_29 = arith.constant 1 : i32
    %62 = vector.broadcast %c1_i32_29 : i32 to vector<8x128xi32>
    %63 = arith.addi %6, %62 : vector<8x128xi32>
    %c128_i32_30 = arith.constant 128 : i32
    %64 = vector.broadcast %c128_i32_30 : i32 to vector<8x128xi32>
    %65 = arith.cmpi slt, %63, %64 : vector<8x128xi32>
    %66 = arith.andi %61, %65 : vector<8x128xi1>
    %cst_31 = arith.constant 0.000000e+00 : f32
    %67 = vector.broadcast %cst_31 : f32 to vector<8x128xf32>
    %68 = arith.select %66, %57, %67 : vector<8x128xi1>, vector<8x128xf32>
    %69 = tpu.concatenate %56, %44, %68 in 0 : vector<8x128xf32>, vector<8x128xf32>, vector<8x128xf32> -> vector<24x128xf32>
    %cst_32 = arith.constant dense<0.000000e+00> : vector<8x128xf32>
    %70 = tpu.matmul %5, %69, %cst_32 {dimension_numbers = #tpu.dot_dimension_numbers<[1], [0], [0], [1], [0, 0, 1, 1], [], []>} : vector<8x24xf32>, vector<24x128xf32>, vector<8x128xf32> -> vector<8x128xf32>
    %71 = vector.broadcast %3 : vector<8x1xf32> to vector<8x128xf32>
    %72 = arith.addf %70, %71 : vector<8x128xf32>
    %73 = arith.addf %8, %72 : vector<8x128xf32>
    %c0_33 = arith.constant 0 : index
    %c0_34 = arith.constant 0 : index
    %c0_35 = arith.constant 0 : index
    %74 = vector.load %arg5[%c0_33, %c0_34, %c0_35] : memref<1x8x128xf32, #tpu.memory_space<vmem>>, vector<1x8x128xf32>
    %75 = vector.shape_cast %74 : vector<1x8x128xf32> to vector<8x128xf32>
    %76 = vector.shape_cast %73 : vector<8x128xf32> to vector<1x8x128xf32>
    tpu.vector_store %arg5[%c0_33, %c0_34, %c0_35], %76 {strides = array<i32>} : memref<1x8x128xf32, #tpu.memory_space<vmem>>, vector<1x8x128xf32>,
    return
  }
  func.func @transform_0(%arg0: i32) -> (i32, i32, i32) {
    %c0_i32 = arith.constant 0 : i32
    %c0_i32_0 = arith.constant 0 : i32
    %c0_i32_1 = arith.constant 0 : i32
    return %arg0, %c0_i32, %c0_i32_0 : i32, i32, i32
  }
  func.func @transform_1(%arg0: i32) -> (i32, i32) {
    %c0_i32 = arith.constant 0 : i32
    %c0_i32_0 = arith.constant 0 : i32
    %c0_i32_1 = arith.constant 0 : i32
    return %c0_i32, %c0_i32_0 : i32, i32
  }
  func.func @transform_2(%arg0: i32) -> (i32, i32) {
    %c0_i32 = arith.constant 0 : i32
    %c0_i32_0 = arith.constant 0 : i32
    %c0_i32_1 = arith.constant 0 : i32
    return %c0_i32, %c0_i32_0 : i32, i32
  }
  func.func @transform_3(%arg0: i32) -> (i32, i32) {
    %c0_i32 = arith.constant 0 : i32
    %c0_i32_0 = arith.constant 0 : i32
    %c0_i32_1 = arith.constant 0 : i32
    return %c0_i32, %c0_i32_0 : i32, i32
  }
  func.func @transform_4(%arg0: i32) -> (i32, i32, i32) {
    %c0_i32 = arith.constant 0 : i32
    %c0_i32_0 = arith.constant 0 : i32
    %c0_i32_1 = arith.constant 0 : i32
    return %arg0, %c0_i32, %c0_i32_0 : i32, i32, i32
  }
}

</mosaic_0001>

<llo_original>
// kernel: tpu_custom_call.1
$region0: #{tpu_custom_call.1}
  #allocation0 [shape = 'u32[]', space=smem, size = 0x4, offset = 0x4, fixed_abs, tag = 'smem constant byte address 0x4 - core index']
  #allocation1 [shape = 'u32[72,128]{1,0:T(1,128)}', space=vmem, size = 0x9000, scoped, tag = 'internal scratch']
  %s0 = inlined_call_operand.hbm [shape: f32[2,8,128], index: 0, kind: input, shape index: {}]
  %s1 = inlined_call_operand.vmem [shape: f32[8,4], index: 1, kind: input, shape index: {}]
  %s2 = inlined_call_operand.vmem [shape: f32[8,24], index: 2, kind: input, shape index: {}]
  %s3 = inlined_call_operand.hbm [shape: f32[8,24], index: 3, kind: input, shape index: {}]
  %s4 = inlined_call_operand.hbm [shape: f32[2,8,128], index: 4, kind: output, shape index: {}]
  %s5 = sld [smem:[#allocation0]]
  $region57: #{tpu_custom_call.1} parent=0
    _
  %s7 = ssub.s32 1, %s5
  %s8 = scalar_select 0, %s7, %s5
  $region1: #{tpu_custom_call.1} parent=0
    #allocation2 [shape = 'u8[8192]{0}', space=vmem, size = 0x2000, scoped, tag = 'input window, operand 0']
    #allocation3 [shape = 's32[2]{0}', space=sflag, size = 0x8, scoped, tag = 'scoped memory for tpu_custom_call.1']
    #allocation4 [shape = 's32[2]{0}', space=sflag, size = 0x8, scoped, tag = 'scoped memory for tpu_custom_call.1']
    #allocation5 [shape = 'u8[4096]{0}', space=vmem, size = 0x1000, scoped, tag = 'input window, operand 3, single buffered']
    #allocation6 [shape = 's32[1]{0}', space=sflag, size = 0x4, scoped, tag = 'scoped memory for tpu_custom_call.1']
    #allocation7 [shape = 'u8[8192]{0}', space=vmem, size = 0x2000, scoped, tag = 'output window, operand 0']
    %9 = vsyncpa [#allocation3], 0
    %s10 = scalar_lea.sflag [#allocation3], 1
    %11 = vsyncpa %s10, 0
    %12 = vsyncpa [#allocation6], 0
    %13 = vsyncpa [#allocation4], 0
    %s14 = scalar_lea.sflag [#allocation4], 1
    %15 = vsyncpa %s14, 0
    loop: start=0, step=1, limit=4
    $region2: #{tpu_custom_call.1} parent=1 // loop_pre_header
      _
    $region3: #{tpu_custom_call.1} parent=1 // loop_header
      %s17 = sphi 0, %s21
      %p18 = scmp.ge.s32.totalorder %s17, 4
      %s27 = sphi 0, %s29
      %s30 = sphi 0, %s27
      %s31 = sphi 0, %s30
      %s47 = sphi 0, %s31
      %s51 = sphi 0, %s51
      %s53 = sphi 0, %s51
      %s54 = sphi 0, %s53
      %s68 = sphi 0, %s54
      %s72 = sphi 0, %s72
      %s74 = sphi 0, %s72
      %s75 = sphi 0, %s74
      %s89 = sphi 0, %s75
      %s93 = sphi 0, %s93
      %s95 = sphi 0, %s93
      %s96 = sphi 0, %s95
      %s110 = sphi 0, %s96
      %s116 = sphi 0, %s118
      %s119 = sphi 0, %s116
      %s120 = sphi 0, %s119
      %s136 = sphi 0, %s120
    $region4: #{tpu_custom_call.1} parent=1 // loop_header_branch
      %20 = sbr.rel (%p18) target = $region8
    $region5: #{tpu_custom_call.1} parent=1 // loop_body
      %s22 = ssub.s32 %s17, 1
      %s23 = ssub.s32 %s17, 2
      %s24 = sadd.s32 %s17, 1
      %s25 = ssub.s32 %s17, %s24
      %p26 = scmp.eq.s32.totalorder %s25, 0
      %s28 = sadd.s32 %s27, 1
      %s29 = scalar_select %p26, %s27, %s28
      %p32 = pneg %p26
      %p33 = scmp.eq.s32.totalorder %s17, 1
      %p34 = por %p32, %p33
      %p35 = scmp.ne.s32.totalorder %s27, %s30
      %p36 = scmp.eq.s32.totalorder %s17, 0
      %p37 = por %p35, %p36
      %p38 = scmp.ne.s32.totalorder %s27, %s30
      %p39 = scmp.eq.s32.totalorder %s22, 1
      %p40 = por %p38, %p39
      %p41 = scmp.ne.s32.totalorder %s30, %s31
      %p42 = scmp.eq.s32.totalorder %s22, 0
      %p43 = por %p41, %p42
      %p44 = scmp.ne.s32.totalorder %s30, %s31
      %p45 = scmp.eq.s32.totalorder %s23, 1
      %p46 = por %p44, %p45
      %p48 = scmp.ne.s32.totalorder %s31, %s47
      %p49 = scmp.eq.s32.totalorder %s23, 0
      %p50 = por %p48, %p49
      %s52 = sadd.s32 %s51, 1
      %p55 = scmp.eq.s32.totalorder %s17, 1
      %p56 = scmp.ne.s32.totalorder %s51, %s53
      %p57 = scmp.eq.s32.totalorder %s17, 0
      %p58 = por %p56, %p57
      %p59 = scmp.ne.s32.totalorder %s51, %s53
      %p60 = scmp.eq.s32.totalorder %s22, 1
      %p61 = por %p59, %p60
      %p62 = scmp.ne.s32.totalorder %s53, %s54
      %p63 = scmp.eq.s32.totalorder %s22, 0
      %p64 = por %p62, %p63
      %p65 = scmp.ne.s32.totalorder %s53, %s54
      %p66 = scmp.eq.s32.totalorder %s23, 1
      %p67 = por %p65, %p66
      %p69 = scmp.ne.s32.totalorder %s54, %s68
      %p70 = scmp.eq.s32.totalorder %s23, 0
      %p71 = por %p69, %p70
      %s73 = sadd.s32 %s72, 1
      %p76 = scmp.eq.s32.totalorder %s17, 1
      %p77 = scmp.ne.s32.totalorder %s72, %s74
      %p78 = scmp.eq.s32.totalorder %s17, 0
      %p79 = por %p77, %p78
      %p80 = scmp.ne.s32.totalorder %s72, %s74
      %p81 = scmp.eq.s32.totalorder %s22, 1
      %p82 = por %p80, %p81
      %p83 = scmp.ne.s32.totalorder %s74, %s75
      %p84 = scmp.eq.s32.totalorder %s22, 0
      %p85 = por %p83, %p84
      %p86 = scmp.ne.s32.totalorder %s74, %s75
      %p87 = scmp.eq.s32.totalorder %s23, 1
      %p88 = por %p86, %p87
      %p90 = scmp.ne.s32.totalorder %s75, %s89
      %p91 = scmp.eq.s32.totalorder %s23, 0
      %p92 = por %p90, %p91
      %s94 = sadd.s32 %s93, 1
      %p97 = scmp.eq.s32.totalorder %s17, 1
      %p98 = scmp.ne.s32.totalorder %s93, %s95
      %p99 = scmp.eq.s32.totalorder %s17, 0
      %p100 = por %p98, %p99
      %p101 = scmp.ne.s32.totalorder %s93, %s95
      %p102 = scmp.eq.s32.totalorder %s22, 1
      %p103 = por %p101, %p102
      %p104 = scmp.ne.s32.totalorder %s95, %s96
      %p105 = scmp.eq.s32.totalorder %s22, 0
      %p106 = por %p104, %p105
      %p107 = scmp.ne.s32.totalorder %s95, %s96
      %p108 = scmp.eq.s32.totalorder %s23, 1
      %p109 = por %p107, %p108
      %p111 = scmp.ne.s32.totalorder %s96, %s110
      %p112 = scmp.eq.s32.totalorder %s23, 0
      %p113 = por %p111, %p112
      %s114 = ssub.s32 %s17, %s24
      %p115 = scmp.eq.s32.totalorder %s114, 0
      %s117 = sadd.s32 %s116, 1
      %s118 = scalar_select %p115, %s116, %s117
      %p121 = pneg %p115
      %p122 = scmp.eq.s32.totalorder %s17, 1
      %p123 = por %p121, %p122
      %p124 = scmp.ne.s32.totalorder %s116, %s119
      %p125 = scmp.eq.s32.totalorder %s17, 0
      %p126 = por %p124, %p125
      %p127 = scmp.ne.s32.totalorder %s116, %s119
      %p128 = scmp.eq.s32.totalorder %s22, 1
      %p129 = por %p127, %p128
      %p130 = scmp.ne.s32.totalorder %s119, %s120
      %p131 = scmp.eq.s32.totalorder %s22, 0
      %p132 = por %p130, %p131
      %p133 = scmp.ne.s32.totalorder %s119, %s120
      %p134 = scmp.eq.s32.totalorder %s23, 1
      %p135 = por %p133, %p134
      %p137 = scmp.ne.s32.totalorder %s120, %s136
      %p138 = scmp.eq.s32.totalorder %s23, 0
      %p139 = por %p137, %p138
      %p140 = scmp.le.s32.totalorder 1, %s17
      %p141 = scmp.lt.s32.totalorder %s17, 3
      %p142 = pnand %p140, %p141
      %p143 = pneg %p142
      // Predicated region
      $region9: #{tpu_custom_call.1} parent=5 // pred_check
        _
      $region10: #{tpu_custom_call.1} parent=5 // pred_check_branch
        %145 = sbr.rel (%p142) target = $region12
      $region11: #{tpu_custom_call.1} parent=5 // pred_region
        %s146 = ssub.s32 %s17, 1
        // Predicated region
        $region13: #{tpu_custom_call.1} parent=11 // pred_check
          %p147 = pneg %p64
        $region14: #{tpu_custom_call.1} parent=11 // pred_check_branch
          %149 = sbr.rel (%p147) target = $region16
        $region15: #{tpu_custom_call.1} parent=11 // pred_region
          _
        $region16: #{tpu_custom_call.1} parent=11 // pred_fallthru
          _
        // Predicated region
        $region17: #{tpu_custom_call.1} parent=11 // pred_check
          %p150 = pneg %p85
        $region18: #{tpu_custom_call.1} parent=11 // pred_check_branch
          %152 = sbr.rel (%p150) target = $region20
        $region19: #{tpu_custom_call.1} parent=11 // pred_region
          _
        $region20: #{tpu_custom_call.1} parent=11 // pred_fallthru
          _
        // Predicated region
        $region21: #{tpu_custom_call.1} parent=11 // pred_check
          %p153 = pneg %p106
        $region22: #{tpu_custom_call.1} parent=11 // pred_check_branch
          %155 = sbr.rel (%p153) target = $region24
        $region23: #{tpu_custom_call.1} parent=11 // pred_region
          %157 = vsyncadd [#allocation6], 0
          %s159 = sshll.u32 %s3, 4
          %s160 = int_to_ptr.hbm [resolvable:$true] %s159
          %s161 = sshll.u32 [#allocation5], 4
          %s162 = int_to_ptr.vmem [resolvable:$true] %s161
          %164 = dma.hbm_to_vmem [thread:$0]  %s160, 128, %s162, [#allocation6]
        $region24: #{tpu_custom_call.1} parent=11 // pred_fallthru
          _
      $region12: #{tpu_custom_call.1} parent=5 // pred_fallthru
        _
      %p165 = scmp.lt.s32.totalorder %s17, 2
      // Predicated region
      $region25: #{tpu_custom_call.1} parent=5 // pred_check
        %p166 = pneg %p165
      $region26: #{tpu_custom_call.1} parent=5 // pred_check_branch
        %168 = sbr.rel (%p166) target = $region28
      $region27: #{tpu_custom_call.1} parent=5 // pred_region
        // Predicated region
        $region29: #{tpu_custom_call.1} parent=27 // pred_check
          %p169 = pneg %p37
        $region30: #{tpu_custom_call.1} parent=27 // pred_check_branch
          %171 = sbr.rel (%p169) target = $region32
        $region31: #{tpu_custom_call.1} parent=27 // pred_region
          %s172 = sand.u32 %s27, 1
          %s173 = scalar_lea.sflag [#allocation3], %s172
          %s174 = sand.u32 %s27, 1
          %s175 = smul.addr %s174, 8
          %s176 = scalar_lea.vmem [#allocation2], %s175
          %178 = vsyncadd %s173, 0
          %s179 = smul.addr %s17, 8
          %s180 = scalar_lea.hbm %s0, %s179
          %s182 = sshll.u32 %s180, 4
          %s183 = int_to_ptr.hbm [resolvable:$true] %s182
          %s184 = sshll.u32 %s176, 4
          %s185 = int_to_ptr.vmem [resolvable:$true] %s184
          %187 = dma.hbm_to_vmem [thread:$0]  %s183, 128, %s185, %s173
        $region32: #{tpu_custom_call.1} parent=27 // pred_fallthru
          _
      $region28: #{tpu_custom_call.1} parent=5 // pred_fallthru
        _
      %p188 = scmp.le.s32.totalorder 1, %s17
      %p189 = scmp.lt.s32.totalorder %s17, 3
      %p190 = pnand %p188, %p189
      %p191 = pneg %p190
      // Predicated region
      $region33: #{tpu_custom_call.1} parent=5 // pred_check
        _
      $region34: #{tpu_custom_call.1} parent=5 // pred_check_branch
        %193 = sbr.rel (%p190) target = $region36
      $region35: #{tpu_custom_call.1} parent=5 // pred_region
        %s194 = ssub.s32 %s17, 1
        %s195 = sand.u32 %s30, 1
        %s196 = scalar_lea.sflag [#allocation3], %s195
        %s197 = sand.u32 %s30, 1
        %s198 = smul.addr %s197, 8
        %s199 = scalar_lea.vmem [#allocation2], %s198
        // Predicated region
        $region37: #{tpu_custom_call.1} parent=35 // pred_check
          %p200 = pneg %p43
        $region38: #{tpu_custom_call.1} parent=35 // pred_check_branch
          %202 = sbr.rel (%p200) target = $region40
        $region39: #{tpu_custom_call.1} parent=35 // pred_region
          %204 = dma.done %s196, 128
        $region40: #{tpu_custom_call.1} parent=35 // pred_fallthru
          _
        // Predicated region
        $region41: #{tpu_custom_call.1} parent=35 // pred_check
          %p205 = pneg %p106
        $region42: #{tpu_custom_call.1} parent=35 // pred_check_branch
          %207 = sbr.rel (%p205) target = $region44
        $region43: #{tpu_custom_call.1} parent=35 // pred_region
          %209 = dma.done [#allocation6], 128
        $region44: #{tpu_custom_call.1} parent=35 // pred_fallthru
          _
        %s210 = sand.u32 %s30, 1
        %s211 = scalar_lea.sflag [#allocation3], %s210
        %s212 = sand.u32 %s30, 1
        %s213 = smul.addr %s212, 8
        %s214 = scalar_lea.vmem [#allocation2], %s213
        %p215 = pneg %p43
        %p216 = pneg %p40
        %p217 = pneg %p64
        %p218 = pneg %p61
        %p219 = pneg %p85
        %p220 = pneg %p82
        %p221 = pneg %p106
        %p222 = pneg %p103
        %p223 = pneg %p132
        %p224 = pneg %p129
        %s225 = sand.u32 %s119, 1
        %s226 = scalar_lea.sflag [#allocation4], %s225
        %s227 = sand.u32 %s119, 1
        %s228 = smul.addr %s227, 8
        %s229 = scalar_lea.vmem [#allocation7], %s228
        %v230 = vld [vmem:[%s1] sm:$0xff]
        %v231 = vld [vmem:[%s2] sm:$0xff]
        %v232 = vld [vmem:[#allocation5] sm:$0xff]
        %v233 = vlaneseq
        %v234 = vand.u32 %v233, 127
        %v235 = vld [vmem:[%s199] sm:$0xff]
        %237 = vset.pattern.permute.xlu0 0
        %238 = vperm.xlu0 %237, %v230
        %v239 = vpop.permute.xlu0 %238
        %v241 = vmul.f32 %v235, %v239
        %242 = vset.pattern.permute.xlu0 1
        %243 = vperm.xlu0 %242, %v230
        %v244 = vpop.permute.xlu0 %243
        %v246 = vadd.f32 %v241, %v244
        %v247 = vmax.f32 %v246, 0.0
        %248 = vrot.lane.b32.xlu0 %v247, 1
        %v249 = vpop.permute.xlu0 %248
        %v250 = vadd.s32 %v234, 4294967295
        %vm251 = vcmp.ge.s32.totalorder %v250, 0
        %vm252 = vcmp.lt.s32.totalorder %v250, 128
        %vm253 = vmand %vm251, %vm252
        %v254 = vsel %vm253, %v249, 0.0
        %255 = vrot.lane.b32.xlu0 %v247, 127
        %v256 = vpop.permute.xlu0 %255
        %v257 = vadd.s32 %v234, 1
        %vm258 = vcmp.ge.s32.totalorder %v257, 0
        %vm259 = vcmp.lt.s32.totalorder %v257, 128
        %vm260 = vmand %vm258, %vm259
        %v261 = vsel %vm260, %v256, 0.0
        %262 = vset.pattern.permute.xlu0 2
        %263 = vperm.xlu0 %262, %v230
        %v264 = vpop.permute.xlu0 %263
        %vm266 = vcmask 195584
        %v268 = vsel %vm266, %v231, 0
        %270 = vmatpush.msra.mxu0 0.0
        %271 = vmatpush.msra.mxu0 0.0
        %272 = vmatpush.msra.mxu0 0.0
        %273 = vmatpush.msra.mxu0 0.0
        %274 = vmatpush.msra.mxu0 0.0
        %275 = vmatpush.msra.mxu0 0.0
        %276 = vmatpush.msra.mxu0 0.0
        %277 = vmatpush.msra.mxu0 0.0
        %278 = vmatpush.msra.mxu0 0.0
        %279 = vmatpush.msra.mxu0 0.0
        %280 = vmatpush.msra.mxu0 0.0
        %281 = vmatpush.msra.mxu0 0.0
        %282 = vmatpush.msra.mxu0 0.0
        %283 = vmatpush.msra.mxu0 %v261
        %284 = vmatpush.msra.mxu0 %v247
        %285 = vmatpush.msra.mxu0 %v254
        %286 = vmatmul.f32.gmra.mxu0 %v268
        %v287 = vpop.f32.mrf.mxu0
        %v288 = vadd.f32 %v264, %v287
        %289 = vdwg.mxu0
        %v290 = vmax.f32 %v288, 0.0
        %291 = vrot.lane.b32.xlu0 %v290, 1
        %v292 = vpop.permute.xlu0 %291
        %v293 = vsel %vm253, %v292, 0.0
        %294 = vrot.lane.b32.xlu0 %v290, 127
        %v295 = vpop.permute.xlu0 %294
        %v296 = vsel %vm260, %v295, 0.0
        %297 = vset.pattern.permute.xlu0 3
        %298 = vperm.xlu0 %297, %v230
        %v299 = vpop.permute.xlu0 %298
        %v302 = vsel %vm266, %v232, 0
        %304 = vmatpush.msra.mxu0 0.0
        %305 = vmatpush.msra.mxu0 0.0
        %306 = vmatpush.msra.mxu0 0.0
        %307 = vmatpush.msra.mxu0 0.0
        %308 = vmatpush.msra.mxu0 0.0
        %309 = vmatpush.msra.mxu0 0.0
        %310 = vmatpush.msra.mxu0 0.0
        %311 = vmatpush.msra.mxu0 0.0
        %312 = vmatpush.msra.mxu0 0.0
        %313 = vmatpush.msra.mxu0 0.0
        %314 = vmatpush.msra.mxu0 0.0
        %315 = vmatpush.msra.mxu0 0.0
        %316 = vmatpush.msra.mxu0 0.0
        %317 = vmatpush.msra.mxu0 %v296
        %318 = vmatpush.msra.mxu0 %v290
        %319 = vmatpush.msra.mxu0 %v293
        %320 = vmatmul.f32.gmra.mxu0 %v302
        %v321 = vpop.f32.mrf.mxu0
        %v322 = vadd.f32 %v299, %v321
        %323 = vdwg.mxu0
        %v324 = vadd.f32 %v235, %v322
        %325 = vst [vmem:[%s229] sm:$0xff] %v324
        %s326 = sand.u32 %s119, 1
        %s327 = scalar_lea.sflag [#allocation4], %s326
        %s328 = sand.u32 %s119, 1
        %s329 = smul.addr %s328, 8
        %s330 = scalar_lea.vmem [#allocation7], %s329
        // Predicated region
        $region45: #{tpu_custom_call.1} parent=35 // pred_check
          %p331 = pneg %p129
        $region46: #{tpu_custom_call.1} parent=35 // pred_check_branch
          %333 = sbr.rel (%p331) target = $region48
        $region47: #{tpu_custom_call.1} parent=35 // pred_region
          %335 = vsyncadd %s327, 0
          %s336 = smul.addr %s22, 8
          %s337 = scalar_lea.hbm %s4, %s336
          %s339 = sshll.u32 %s330, 4
          %s340 = int_to_ptr.vmem [resolvable:$true] %s339
          %s341 = sshll.u32 %s337, 4
          %s342 = int_to_ptr.hbm [resolvable:$true] %s341
          %344 = dma.vmem_to_hbm [thread:$0]  %s340, 128, %s342, %s327
        $region48: #{tpu_custom_call.1} parent=35 // pred_fallthru
          _
      $region36: #{tpu_custom_call.1} parent=5 // pred_fallthru
        _
      %p345 = scmp.le.s32.totalorder 2, %s17
      // Predicated region
      $region49: #{tpu_custom_call.1} parent=5 // pred_check
        %p346 = pneg %p345
      $region50: #{tpu_custom_call.1} parent=5 // pred_check_branch
        %348 = sbr.rel (%p346) target = $region52
      $region51: #{tpu_custom_call.1} parent=5 // pred_region
        %s349 = ssub.s32 %s17, 2
        // Predicated region
        $region53: #{tpu_custom_call.1} parent=51 // pred_check
          %p350 = pneg %p135
        $region54: #{tpu_custom_call.1} parent=51 // pred_check_branch
          %352 = sbr.rel (%p350) target = $region56
        $region55: #{tpu_custom_call.1} parent=51 // pred_region
          %s353 = sand.u32 %s120, 1
          %s354 = scalar_lea.sflag [#allocation4], %s353
          %s355 = sand.u32 %s120, 1
          %s356 = smul.addr %s355, 8
          %s357 = scalar_lea.vmem [#allocation7], %s356
          %359 = dma.done %s354, 128
        $region56: #{tpu_custom_call.1} parent=51 // pred_fallthru
          _
      $region52: #{tpu_custom_call.1} parent=5 // pred_fallthru
        _
    $region6: #{tpu_custom_call.1} parent=1 // loop_footer
      %s21 = sadd.s32 1, %s17
    $region7: #{tpu_custom_call.1} parent=1 // loop_footer_branch
      %16 = sbr.rel target = $region3
    $region8: #{tpu_custom_call.1} parent=1 // loop_exit
      _
    %360 = vsyncpa [#allocation3], 1
    %s361 = scalar_lea.sflag [#allocation3], 1
    %362 = vsyncpa %s361, 1
    %363 = vsyncpa [#allocation6], 1
    %364 = vsyncpa [#allocation4], 1
    %s365 = scalar_lea.sflag [#allocation4], 1
    %366 = vsyncpa %s365, 1

</llo_original>
